<compile_context>
chip_gen: v7x
topology: tpu7x:2x2x1
jax: 0.10.0
libtpu: 0.0.40
codegen_flags: <defaults>
</compile_context>

<pallas_src>
import functools

import jax
import jax.numpy as jnp
from jax.experimental import pallas as pl
from jax.experimental.pallas import tpu as pltpu


def _round_up(n, m=128):
    return ((n + m - 1) // m) * m


def _vmem_limit_bytes():
    """Per-generation VMEM budget: ~75% of physical, capped at 100 MiB."""
    try:
        cap = pltpu.get_tpu_info().vmem_capacity_bytes
    except Exception:  # info unavailable -> conservative (fits v7x too)
        cap = 64 * 1024 * 1024
    return int(min(cap * 3 // 4, 100 * 1024 * 1024))


# ----------------------------------------------------------------------------
# Fused Pallas kernel: the whole network for one batch tile
# ----------------------------------------------------------------------------
def _fused_temporal_kernel(*refs, filter_widths, b_tile, t_in):
    """refs = (x_ref, w_0..w_{n-1}, shifts_ref, o_ref)

    x_ref:      (t_in * b_tile, C_in_pad)    bf16, time-major packed (row = t*b_tile + b)
    w_i:        (K_i * C_in_pad_i, C_pad)    bf16, BN scale folded in, tap-stacked
    shifts_ref: (n_conv, C_pad)              f32 folded-BN shifts
    o_ref:      (T_final * b_tile, C_pad)    bf16, time-major packed
    """
    x_ref = refs[0]
    o_ref = refs[-1]
    shifts_ref = refs[-2]
    w_refs = refs[1:-2]

    def conv_relu(h_bf, t_cur, w_ref, idx, K, dilation):
        # h_bf: (t_cur * b_tile, C_in) bf16. One lane-dense MXU matmul with
        # M = b_tile * t_out and contraction K * C_in (taps fused).
        t_out = t_cur - (K - 1) * dilation
        if K == 1:
            xs = h_bf
        else:
            xs = jnp.concatenate(
                [h_bf[k * dilation * b_tile:(k * dilation + t_out) * b_tile, :]
                 for k in range(K)],
                axis=-1,
            )
        acc = jnp.dot(xs, w_ref[...], preferred_element_type=jnp.float32)
        y = acc + shifts_ref[idx:idx + 1, :]       # folded-BN shift (f32)
        return jnp.maximum(y, 0.0), t_out          # Dropout = identity

    # expand conv + BN + ReLU (input consumed directly as bf16)
    y0, t_cur = conv_relu(x_ref[...], t_in, w_refs[0], 0, filter_widths[0], 1)
    h = y0.astype(jnp.bfloat16)                    # bf16 inter-layer activation

    idx = 1
    next_dilation = filter_widths[0]
    for i in range(1, len(filter_widths)):
        fw = filter_widths[i]
        pad = (fw - 1) * next_dilation // 2
        # residual slice: contiguous rows in the time-major packing
        res = h[pad * b_tile:(t_cur - pad) * b_tile, :]
        y1, t1 = conv_relu(h, t_cur, w_refs[idx], idx, fw, next_dilation)
        y2, t2 = conv_relu(y1.astype(jnp.bfloat16), t1, w_refs[idx + 1], idx + 1, 1, 1)
        h = (res.astype(jnp.float32) + y2).astype(jnp.bfloat16)   # residual add in f32
        t_cur = t2
        idx += 2
        next_dilation *= fw

    o_ref[...] = h


# ----------------------------------------------------------------------------
# Parameter setup / BN folding / lane padding / tap stacking
# ----------------------------------------------------------------------------
def _prepare_layers(params, filter_widths, c_in_pad, c_pad, eps=1e-5):
    """Fold BN scale into bf16 weights, pad lane-dense, stack taps along C_in."""

    def prep(w, bn, cin_pad):
        K, c_in, c_out = w.shape
        gamma, beta, mean, var = bn
        scale = gamma / jnp.sqrt(var + eps)
        shift = beta - mean * scale
        w_f = w * scale[None, None, :]             # fold BN scale into weights
        w_p = jnp.pad(w_f, ((0, 0), (0, cin_pad - c_in), (0, c_pad - c_out)))
        w_s = w_p.reshape(K * cin_pad, c_pad).astype(jnp.bfloat16)
        s_p = jnp.pad(shift, (0, c_pad - c_out))   # pads stay 0 -> relu(0)=0
        return w_s, s_p

    weights, shifts = [], []
    w, s = prep(params["expand_w"], params["expand_bn"], c_in_pad)
    weights.append(w); shifts.append(s)
    for blk in params["blocks"]:
        w, s = prep(blk["w1"], blk["bn1"], c_pad); weights.append(w); shifts.append(s)
        w, s = prep(blk["w2"], blk["bn2"], c_pad); weights.append(w); shifts.append(s)
    return weights, jnp.stack(shifts, axis=0)


def init_params(key, in_channels, filter_widths, channels):
    def conv_w(k, K, c_in, c_out):
        # PyTorch weight is (c_out, c_in, K); we store (K, c_in, c_out).
        std = 1.0 / jnp.sqrt(c_in * K)
        return jax.random.normal(k, (K, c_in, c_out), jnp.float32) * std

    def bn(k, c):
        kg, kb, km, kv = jax.random.split(k, 4)
        gamma = 1.0 + 0.1 * jax.random.normal(kg, (c,), jnp.float32)
        beta = 0.1 * jax.random.normal(kb, (c,), jnp.float32)
        mean = 0.1 * jax.random.normal(km, (c,), jnp.float32)
        var = 1.0 + 0.1 * jax.random.uniform(kv, (c,), jnp.float32)
        return gamma, beta, mean, var

    keys = jax.random.split(key, 2 + 4 * (len(filter_widths) - 1))
    params = {
        "expand_w": conv_w(keys[0], filter_widths[0], in_channels, channels),
        "expand_bn": bn(keys[1], channels),
        "blocks": [],
    }
    kidx = 2
    for i in range(1, len(filter_widths)):
        params["blocks"].append({
            "w1": conv_w(keys[kidx], filter_widths[i], channels, channels),
            "bn1": bn(keys[kidx + 1], channels),
            "w2": conv_w(keys[kidx + 2], 1, channels, channels),
            "bn2": bn(keys[kidx + 3], channels),
        })
        kidx += 4
    return params


# ----------------------------------------------------------------------------
# Forward pass: one fused pallas_call for the whole network
# ----------------------------------------------------------------------------
@functools.partial(jax.jit, static_argnames=("filter_widths", "channels", "b_tile"))
def temporal_model_forward(pos_3d, pos_2d, bone_angle, params, *,
                           filter_widths, channels, b_tile=None):
    filter_widths = tuple(filter_widths)
    for fw in filter_widths[1:]:
        if fw % 2 != 1:
            raise ValueError("filter widths after the first must be odd "
                             "(residual slice alignment)")

    B, T = pos_2d.shape[:2]
    x = jnp.concatenate(
        [pos_3d.reshape(B, T, -1), pos_2d.reshape(B, T, -1), bone_angle.reshape(B, T, -1)],
        axis=-1,
    )  # (B, T, in_channels), channels-last
    c_in = x.shape[-1]
    c_in_pad = _round_up(c_in)
    c_pad = _round_up(channels)

    weights, shifts = _prepare_layers(params, filter_widths, c_in_pad, c_pad)

    # Final temporal length (valid convs only).
    t_out = T - (filter_widths[0] - 1)
    nd = filter_widths[0]
    for fw in filter_widths[1:]:
        t_out -= (fw - 1) * nd
        nd *= fw
    assert t_out > 0, "sequence too short for this receptive field"

    # Batch tiling: pack b_tile batch elements into the matmul M dimension.
    if b_tile is None:
        b_tile = min(B, 8)
    b_pad = -(-B // b_tile) * b_tile
    n_bt = b_pad // b_tile

    # Time-major pack each batch tile: row = t * b_tile + b (lane-dense bf16).
    x_p = jnp.pad(x, ((0, b_pad - B), (0, 0), (0, c_in_pad - c_in))).astype(jnp.bfloat16)
    x_p = (x_p.reshape(n_bt, b_tile, T, c_in_pad)
               .transpose(0, 2, 1, 3)
               .reshape(n_bt, T * b_tile, c_in_pad))

    in_specs = [pl.BlockSpec((None, T * b_tile, c_in_pad), lambda i: (i, 0, 0))]
    for w in weights:  # grid-invariant weights: constant index map -> DMA'd once
        in_specs.append(pl.BlockSpec(w.shape, lambda i: (0, 0)))
    in_specs.append(pl.BlockSpec(shifts.shape, lambda i: (0, 0)))
    out_specs = pl.BlockSpec((None, t_out * b_tile, c_pad), lambda i: (i, 0, 0))

    out = pl.pallas_call(
        functools.partial(_fused_temporal_kernel,
                          filter_widths=filter_widths, b_tile=b_tile, t_in=T),
        out_shape=jax.ShapeDtypeStruct((n_bt, t_out * b_tile, c_pad), jnp.bfloat16),
        grid=(n_bt,),
        in_specs=in_specs,
        out_specs=out_specs,
        compiler_params=pltpu.CompilerParams(
            dimension_semantics=("parallel",),        # batch tiles across TCs (v7x)
            vmem_limit_bytes=_vmem_limit_bytes(),     # per-generation budget
        ),
    )(x_p, *weights, shifts)

    # Un-pack time-major layout and match the PyTorch output (B, channels, T_out).
    out = (out.reshape(n_bt, t_out, b_tile, c_pad)
              .transpose(0, 2, 1, 3)
              .reshape(b_pad, t_out, c_pad))
    out = out[:B, :, :channels].astype(jnp.float32)
    return jnp.transpose(out, (0, 2, 1))


# ----------------------------------------------------------------------------
# Pure-JAX reference (mirrors the kernel math: folded bf16 weights, bf16
# inter-layer activations, f32 epilogue/residual) for correctness check.
# ----------------------------------------------------------------------------
def _reference_forward(pos_3d, pos_2d, bone_angle, params, filter_widths, channels):
    filter_widths = tuple(filter_widths)
    B, T = pos_2d.shape[:2]
    x = jnp.concatenate(
        [pos_3d.reshape(B, T, -1), pos_2d.reshape(B, T, -1), bone_angle.reshape(B, T, -1)],
        axis=-1,
    )
    c_in = x.shape[-1]
    c_in_pad = _round_up(c_in)
    c_pad = _round_up(channels)
    weights, shifts = _prepare_layers(params, filter_widths, c_in_pad, c_pad)
    x_bf = jnp.pad(x, ((0, 0), (0, 0), (0, c_in_pad - c_in))).astype(jnp.bfloat16)

    def conv_relu(h_bf, w, shift, K, dilation):
        t_o = h_bf.shape[1] - (K - 1) * dilation
        if K == 1:
            xs = h_bf[:, :t_o, :]
        else:
            xs = jnp.concatenate(
                [h_bf[:, k * dilation:k * dilation + t_o, :] for k in range(K)], axis=-1)
        acc = jnp.einsum("btc,cd->btd", xs, w, preferred_element_type=jnp.float32)
        return jnp.maximum(acc + shift[None, None, :], 0.0)

    h = conv_relu(x_bf, weights[0], shifts[0], filter_widths[0], 1).astype(jnp.bfloat16)
    idx = 1
    nd = filter_widths[0]
    for fw in filter_widths[1:]:
        pad = (fw - 1) * nd // 2
        res = h[:, pad:h.shape[1] - pad, :]
        y1 = conv_relu(h, weights[idx], shifts[idx], fw, nd).astype(jnp.bfloat16)
        y2 = conv_relu(y1, weights[idx + 1], shifts[idx + 1], 1, 1)
        h = (res.astype(jnp.float32) + y2).astype(jnp.bfloat16)
        idx += 2
        nd *= fw
    out = h[:, :, :channels].astype(jnp.float32)
    return jnp.transpose(out, (0, 2, 1))


if __name__ == "__main__":
    # Small shapes consistent with the module's forward:
    #   pos_3d: (B, T, V3, C3), pos_2d: (B, T, V1, C1), bone_angle: (B, T, V2, C2)
    B, T = 4, 16
    V, C3, C1, C2 = 4, 3, 2, 1
    filter_widths = (3, 3)
    channels = 32
    in_channels = V * (C3 + C1 + C2)  # 24

    key = jax.random.PRNGKey(0)
    k3, k2, ka, kp = jax.random.split(key, 4)
    pos_3d = jax.random.normal(k3, (B, T, V, C3), jnp.float32)
    pos_2d = jax.random.normal(k2, (B, T, V, C1), jnp.float32)
    bone_angle = jax.random.normal(ka, (B, T, V, C2), jnp.float32)

    params = init_params(kp, in_channels, filter_widths, channels)

    out = temporal_model_forward(
        pos_3d, pos_2d, bone_angle, params,
        filter_widths=filter_widths, channels=channels, b_tile=2,
    )
    out = jax.block_until_ready(out)
    assert out.shape == (B, channels, 8), out.shape  # T: 16 -> 14 -> 8

    ref = _reference_forward(pos_3d, pos_2d, bone_angle, params, filter_widths, channels)
    err = float(jnp.max(jnp.abs(out - ref)))
    assert jnp.allclose(out, ref, atol=2e-2, rtol=2e-2), f"mismatch vs reference: {err}"

    print("KERNEL_OK")
</pallas_src>

<mosaic_0001>
module attributes {stable_mosaic.version = 11 : i64} {
  func.func @_fused_temporal_kernel(%arg0: i32, %arg1: memref<1x32x128xbf16, #tpu.memory_space<vmem>>, %arg2: memref<384x128xbf16, #tpu.memory_space<vmem>>, %arg3: memref<384x128xbf16, #tpu.memory_space<vmem>>, %arg4: memref<128x128xbf16, #tpu.memory_space<vmem>>, %arg5: memref<3x128xf32, #tpu.memory_space<vmem>>, %arg6: memref<1x16x128xbf16, #tpu.memory_space<vmem>>) attributes {dimension_semantics = [#tpu.dimension_semantics<parallel>], iteration_bounds = array<i64: 2>, scalar_prefetch = 0 : i64, scratch_operands = 0 : i64, tpu.core_type = #tpu.core_type<tc>, window_params = [{transform_indices = @transform_0, window_bounds = array<i64: 1, 32, 128>}, {pipeline_mode = #tpu.pipeline_mode<synchronous>, transform_indices = @transform_1, window_bounds = array<i64: 384, 128>}, {pipeline_mode = #tpu.pipeline_mode<synchronous>, transform_indices = @transform_2, window_bounds = array<i64: 384, 128>}, {pipeline_mode = #tpu.pipeline_mode<synchronous>, transform_indices = @transform_3, window_bounds = array<i64: 128, 128>}, {pipeline_mode = #tpu.pipeline_mode<synchronous>, transform_indices = @transform_4, window_bounds = array<i64: 3, 128>}, {transform_indices = @transform_5, window_bounds = array<i64: 1, 16, 128>}]} {
    %c0 = arith.constant 0 : index
    %c0_0 = arith.constant 0 : index
    %c0_1 = arith.constant 0 : index
    %0 = vector.load %arg1[%c0, %c0_0, %c0_1] : memref<1x32x128xbf16, #tpu.memory_space<vmem>>, vector<1x32x128xbf16>
    %1 = vector.shape_cast %0 : vector<1x32x128xbf16> to vector<32x128xbf16>
    %2 = vector.extract_strided_slice %1 {offsets = [0, 0], sizes = [28, 128], strides = [1, 1]} : vector<32x128xbf16> to vector<28x128xbf16>
    %3 = vector.extract_strided_slice %1 {offsets = [2, 0], sizes = [28, 128], strides = [1, 1]} : vector<32x128xbf16> to vector<28x128xbf16>
    %4 = vector.extract_strided_slice %1 {offsets = [4, 0], sizes = [28, 128], strides = [1, 1]} : vector<32x128xbf16> to vector<28x128xbf16>
    %5 = tpu.concatenate %2, %3, %4 in 1 : vector<28x128xbf16>, vector<28x128xbf16>, vector<28x128xbf16> -> vector<28x384xbf16>
    %c0_2 = arith.constant 0 : index
    %c0_3 = arith.constant 0 : index
    %6 = vector.load %arg2[%c0_2, %c0_3] : memref<384x128xbf16, #tpu.memory_space<vmem>>, vector<384x128xbf16>
    %cst = arith.constant dense<0.000000e+00> : vector<28x128xf32>
    %7 = tpu.matmul %5, %6, %cst {dimension_numbers = #tpu.dot_dimension_numbers<[1], [0], [0], [1], [0, 0, 1, 1], [], []>} : vector<28x384xbf16>, vector<384x128xbf16>, vector<28x128xf32> -> vector<28x128xf32>
    %c0_4 = arith.constant 0 : index
    %c0_5 = arith.constant 0 : index
    %8 = vector.load %arg5[%c0_4, %c0_5] : memref<3x128xf32, #tpu.memory_space<vmem>>, vector<1x128xf32>
    %9 = vector.broadcast %8 : vector<1x128xf32> to vector<28x128xf32>
    %10 = arith.addf %7, %9 : vector<28x128xf32>
    %cst_6 = arith.constant 0.000000e+00 : f32
    %11 = vector.broadcast %cst_6 : f32 to vector<28x128xf32>
    %12 = arith.maximumf %10, %11 : vector<28x128xf32>
    %13 = arith.truncf %12 : vector<28x128xf32> to vector<28x128xbf16>
    %14 = vector.extract_strided_slice %13 {offsets = [6, 0], sizes = [16, 128], strides = [1, 1]} : vector<28x128xbf16> to vector<16x128xbf16>
    %15 = vector.extract_strided_slice %13 {offsets = [0, 0], sizes = [16, 128], strides = [1, 1]} : vector<28x128xbf16> to vector<16x128xbf16>
    %16 = vector.extract_strided_slice %13 {offsets = [6, 0], sizes = [16, 128], strides = [1, 1]} : vector<28x128xbf16> to vector<16x128xbf16>
    %17 = vector.extract_strided_slice %13 {offsets = [12, 0], sizes = [16, 128], strides = [1, 1]} : vector<28x128xbf16> to vector<16x128xbf16>
    %18 = tpu.concatenate %15, %16, %17 in 1 : vector<16x128xbf16>, vector<16x128xbf16>, vector<16x128xbf16> -> vector<16x384xbf16>
    %c0_7 = arith.constant 0 : index
    %c0_8 = arith.constant 0 : index
    %19 = vector.load %arg3[%c0_7, %c0_8] : memref<384x128xbf16, #tpu.memory_space<vmem>>, vector<384x128xbf16>
    %cst_9 = arith.constant dense<0.000000e+00> : vector<16x128xf32>
    %20 = tpu.matmul %18, %19, %cst_9 {dimension_numbers = #tpu.dot_dimension_numbers<[1], [0], [0], [1], [0, 0, 1, 1], [], []>} : vector<16x384xbf16>, vector<384x128xbf16>, vector<16x128xf32> -> vector<16x128xf32>
    %c1 = arith.constant 1 : index
    %c0_10 = arith.constant 0 : index
    %21 = vector.load %arg5[%c1, %c0_10] : memref<3x128xf32, #tpu.memory_space<vmem>>, vector<1x128xf32>
    %22 = vector.broadcast %21 : vector<1x128xf32> to vector<16x128xf32>
    %23 = arith.addf %20, %22 : vector<16x128xf32>
    %cst_11 = arith.constant 0.000000e+00 : f32
    %24 = vector.broadcast %cst_11 : f32 to vector<16x128xf32>
    %25 = arith.maximumf %23, %24 : vector<16x128xf32>
    %26 = arith.truncf %25 : vector<16x128xf32> to vector<16x128xbf16>
    %c0_12 = arith.constant 0 : index
    %c0_13 = arith.constant 0 : index
    %27 = vector.load %arg4[%c0_12, %c0_13] : memref<128x128xbf16, #tpu.memory_space<vmem>>, vector<128x128xbf16>
    %cst_14 = arith.constant dense<0.000000e+00> : vector<16x128xf32>
    %28 = tpu.matmul %26, %27, %cst_14 {dimension_numbers = #tpu.dot_dimension_numbers<[1], [0], [0], [1], [0, 0, 1, 1], [], []>} : vector<16x128xbf16>, vector<128x128xbf16>, vector<16x128xf32> -> vector<16x128xf32>
    %c2 = arith.constant 2 : index
    %c0_15 = arith.constant 0 : index
    %29 = vector.load %arg5[%c2, %c0_15] : memref<3x128xf32, #tpu.memory_space<vmem>>, vector<1x128xf32>
    %30 = vector.broadcast %29 : vector<1x128xf32> to vector<16x128xf32>
    %31 = arith.addf %28, %30 : vector<16x128xf32>
    %cst_16 = arith.constant 0.000000e+00 : f32
    %32 = vector.broadcast %cst_16 : f32 to vector<16x128xf32>
    %33 = arith.maximumf %31, %32 : vector<16x128xf32>
    %34 = arith.extf %14 : vector<16x128xbf16> to vector<16x128xf32>
    %35 = arith.addf %34, %33 : vector<16x128xf32>
    %36 = arith.truncf %35 : vector<16x128xf32> to vector<16x128xbf16>
    %c0_17 = arith.constant 0 : index
    %c0_18 = arith.constant 0 : index
    %c0_19 = arith.constant 0 : index
    %37 = vector.load %arg6[%c0_17, %c0_18, %c0_19] : memref<1x16x128xbf16, #tpu.memory_space<vmem>>, vector<1x16x128xbf16>
    %38 = vector.shape_cast %37 : vector<1x16x128xbf16> to vector<16x128xbf16>
    %39 = vector.shape_cast %36 : vector<16x128xbf16> to vector<1x16x128xbf16>
    tpu.vector_store %arg6[%c0_17, %c0_18, %c0_19], %39 {strides = array<i32>} : memref<1x16x128xbf16, #tpu.memory_space<vmem>>, vector<1x16x128xbf16>,
    return
  }
  func.func @transform_0(%arg0: i32) -> (i32, i32, i32) {
    %c0_i32 = arith.constant 0 : i32
    %c0_i32_0 = arith.constant 0 : i32
    %c0_i32_1 = arith.constant 0 : i32
    return %arg0, %c0_i32, %c0_i32_0 : i32, i32, i32
  }
  func.func @transform_1(%arg0: i32) -> (i32, i32) {
    %c0_i32 = arith.constant 0 : i32
    %c0_i32_0 = arith.constant 0 : i32
    %c0_i32_1 = arith.constant 0 : i32
    return %c0_i32, %c0_i32_0 : i32, i32
  }
  func.func @transform_2(%arg0: i32) -> (i32, i32) {
    %c0_i32 = arith.constant 0 : i32
    %c0_i32_0 = arith.constant 0 : i32
    %c0_i32_1 = arith.constant 0 : i32
    return %c0_i32, %c0_i32_0 : i32, i32
  }
  func.func @transform_3(%arg0: i32) -> (i32, i32) {
    %c0_i32 = arith.constant 0 : i32
    %c0_i32_0 = arith.constant 0 : i32
    %c0_i32_1 = arith.constant 0 : i32
    return %c0_i32, %c0_i32_0 : i32, i32
  }
  func.func @transform_4(%arg0: i32) -> (i32, i32) {
    %c0_i32 = arith.constant 0 : i32
    %c0_i32_0 = arith.constant 0 : i32
    %c0_i32_1 = arith.constant 0 : i32
    return %c0_i32, %c0_i32_0 : i32, i32
  }
  func.func @transform_5(%arg0: i32) -> (i32, i32, i32) {
    %c0_i32 = arith.constant 0 : i32
    %c0_i32_0 = arith.constant 0 : i32
    %c0_i32_1 = arith.constant 0 : i32
    return %arg0, %c0_i32, %c0_i32_0 : i32, i32, i32
  }
}

</mosaic_0001>

<llo_original>
// kernel: temporal_model_forward.1
$region0: #{temporal_model_forward.1}
  #allocation0 [shape = 'u32[]', space=smem, size = 0x4, offset = 0x4, fixed_abs, tag = 'smem constant byte address 0x4 - core index']
  #allocation1 [shape = 'u32[144,128]{1,0:T(1,128)}', space=vmem, size = 0x12000, scoped, tag = 'internal scratch']
  %s0 = inlined_call_operand.vmem [shape: bf16[2,32,128], index: 0, kind: input, shape index: {}]
  %s1 = inlined_call_operand.vmem [shape: bf16[384,128], index: 1, kind: input, shape index: {}]
  %s2 = inlined_call_operand.vmem [shape: bf16[384,128], index: 2, kind: input, shape index: {}]
  %s3 = inlined_call_operand.vmem [shape: bf16[128,128], index: 3, kind: input, shape index: {}]
  %s4 = inlined_call_operand.vmem [shape: f32[3,128], index: 4, kind: input, shape index: {}]
  %s5 = inlined_call_operand.vmem [shape: bf16[2,16,128], index: 5, kind: output, shape index: {}]
  %s6 = sld [smem:[#allocation0]]
  $region53: #{temporal_model_forward.1} parent=0
    _
  %s8 = ssub.s32 1, %s6
  %s9 = scalar_select 0, %s8, %s6
  loop: start=0, step=1, limit=4
  $region2: #{temporal_model_forward.1} parent=0 // loop_pre_header
    _
  $region3: #{temporal_model_forward.1} parent=0 // loop_header
    %s11 = sphi 0, %s15
    %p12 = scmp.ge.s32.totalorder %s11, 4
    %s21 = sphi 0, %s23
    %s24 = sphi 0, %s21
    %s25 = sphi 0, %s24
    %s41 = sphi 0, %s25
    %s45 = sphi 0, %s45
    %s47 = sphi 0, %s45
    %s48 = sphi 0, %s47
    %s62 = sphi 0, %s48
    %s66 = sphi 0, %s66
    %s68 = sphi 0, %s66
    %s69 = sphi 0, %s68
    %s83 = sphi 0, %s69
    %s87 = sphi 0, %s87
    %s89 = sphi 0, %s87
    %s90 = sphi 0, %s89
    %s104 = sphi 0, %s90
    %s108 = sphi 0, %s108
    %s110 = sphi 0, %s108
    %s111 = sphi 0, %s110
    %s125 = sphi 0, %s111
    %s131 = sphi 0, %s133
    %s134 = sphi 0, %s131
    %s135 = sphi 0, %s134
    %s151 = sphi 0, %s135
  $region4: #{temporal_model_forward.1} parent=0 // loop_header_branch
    %14 = sbr.rel (%p12) target = $region8
  $region5: #{temporal_model_forward.1} parent=0 // loop_body
    %s16 = ssub.s32 %s11, 1
    %s17 = ssub.s32 %s11, 2
    %s18 = sadd.s32 %s11, 1
    %s19 = ssub.s32 %s11, %s18
    %p20 = scmp.eq.s32.totalorder %s19, 0
    %s22 = sadd.s32 %s21, 1
    %s23 = scalar_select %p20, %s21, %s22
    %p26 = pneg %p20
    %p27 = scmp.eq.s32.totalorder %s11, 1
    %p28 = por %p26, %p27
    %p29 = scmp.ne.s32.totalorder %s21, %s24
    %p30 = scmp.eq.s32.totalorder %s11, 0
    %p31 = por %p29, %p30
    %p32 = scmp.ne.s32.totalorder %s21, %s24
    %p33 = scmp.eq.s32.totalorder %s16, 1
    %p34 = por %p32, %p33
    %p35 = scmp.ne.s32.totalorder %s24, %s25
    %p36 = scmp.eq.s32.totalorder %s16, 0
    %p37 = por %p35, %p36
    %p38 = scmp.ne.s32.totalorder %s24, %s25
    %p39 = scmp.eq.s32.totalorder %s17, 1
    %p40 = por %p38, %p39
    %p42 = scmp.ne.s32.totalorder %s25, %s41
    %p43 = scmp.eq.s32.totalorder %s17, 0
    %p44 = por %p42, %p43
    %s46 = sadd.s32 %s45, 1
    %p49 = scmp.eq.s32.totalorder %s11, 1
    %p50 = scmp.ne.s32.totalorder %s45, %s47
    %p51 = scmp.eq.s32.totalorder %s11, 0
    %p52 = por %p50, %p51
    %p53 = scmp.ne.s32.totalorder %s45, %s47
    %p54 = scmp.eq.s32.totalorder %s16, 1
    %p55 = por %p53, %p54
    %p56 = scmp.ne.s32.totalorder %s47, %s48
    %p57 = scmp.eq.s32.totalorder %s16, 0
    %p58 = por %p56, %p57
    %p59 = scmp.ne.s32.totalorder %s47, %s48
    %p60 = scmp.eq.s32.totalorder %s17, 1
    %p61 = por %p59, %p60
    %p63 = scmp.ne.s32.totalorder %s48, %s62
    %p64 = scmp.eq.s32.totalorder %s17, 0
    %p65 = por %p63, %p64
    %s67 = sadd.s32 %s66, 1
    %p70 = scmp.eq.s32.totalorder %s11, 1
    %p71 = scmp.ne.s32.totalorder %s66, %s68
    %p72 = scmp.eq.s32.totalorder %s11, 0
    %p73 = por %p71, %p72
    %p74 = scmp.ne.s32.totalorder %s66, %s68
    %p75 = scmp.eq.s32.totalorder %s16, 1
    %p76 = por %p74, %p75
    %p77 = scmp.ne.s32.totalorder %s68, %s69
    %p78 = scmp.eq.s32.totalorder %s16, 0
    %p79 = por %p77, %p78
    %p80 = scmp.ne.s32.totalorder %s68, %s69
    %p81 = scmp.eq.s32.totalorder %s17, 1
    %p82 = por %p80, %p81
    %p84 = scmp.ne.s32.totalorder %s69, %s83
    %p85 = scmp.eq.s32.totalorder %s17, 0
    %p86 = por %p84, %p85
    %s88 = sadd.s32 %s87, 1
    %p91 = scmp.eq.s32.totalorder %s11, 1
    %p92 = scmp.ne.s32.totalorder %s87, %s89
    %p93 = scmp.eq.s32.totalorder %s11, 0
    %p94 = por %p92, %p93
    %p95 = scmp.ne.s32.totalorder %s87, %s89
    %p96 = scmp.eq.s32.totalorder %s16, 1
    %p97 = por %p95, %p96
    %p98 = scmp.ne.s32.totalorder %s89, %s90
    %p99 = scmp.eq.s32.totalorder %s16, 0
    %p100 = por %p98, %p99
    %p101 = scmp.ne.s32.totalorder %s89, %s90
    %p102 = scmp.eq.s32.totalorder %s17, 1
    %p103 = por %p101, %p102
    %p105 = scmp.ne.s32.totalorder %s90, %s104
    %p106 = scmp.eq.s32.totalorder %s17, 0
    %p107 = por %p105, %p106
    %s109 = sadd.s32 %s108, 1
    %p112 = scmp.eq.s32.totalorder %s11, 1
    %p113 = scmp.ne.s32.totalorder %s108, %s110
    %p114 = scmp.eq.s32.totalorder %s11, 0
    %p115 = por %p113, %p114
    %p116 = scmp.ne.s32.totalorder %s108, %s110
    %p117 = scmp.eq.s32.totalorder %s16, 1
    %p118 = por %p116, %p117
    %p119 = scmp.ne.s32.totalorder %s110, %s111
    %p120 = scmp.eq.s32.totalorder %s16, 0
    %p121 = por %p119, %p120
    %p122 = scmp.ne.s32.totalorder %s110, %s111
    %p123 = scmp.eq.s32.totalorder %s17, 1
    %p124 = por %p122, %p123
    %p126 = scmp.ne.s32.totalorder %s111, %s125
    %p127 = scmp.eq.s32.totalorder %s17, 0
    %p128 = por %p126, %p127
    %s129 = ssub.s32 %s11, %s18
    %p130 = scmp.eq.s32.totalorder %s129, 0
    %s132 = sadd.s32 %s131, 1
    %s133 = scalar_select %p130, %s131, %s132
    %p136 = pneg %p130
    %p137 = scmp.eq.s32.totalorder %s11, 1
    %p138 = por %p136, %p137
    %p139 = scmp.ne.s32.totalorder %s131, %s134
    %p140 = scmp.eq.s32.totalorder %s11, 0
    %p141 = por %p139, %p140
    %p142 = scmp.ne.s32.totalorder %s131, %s134
    %p143 = scmp.eq.s32.totalorder %s16, 1
    %p144 = por %p142, %p143
    %p145 = scmp.ne.s32.totalorder %s134, %s135
    %p146 = scmp.eq.s32.totalorder %s16, 0
    %p147 = por %p145, %p146
    %p148 = scmp.ne.s32.totalorder %s134, %s135
    %p149 = scmp.eq.s32.totalorder %s17, 1
    %p150 = por %p148, %p149
    %p152 = scmp.ne.s32.totalorder %s135, %s151
    %p153 = scmp.eq.s32.totalorder %s17, 0
    %p154 = por %p152, %p153
    %p155 = scmp.le.s32.totalorder 1, %s11
    %p156 = scmp.lt.s32.totalorder %s11, 3
    %p157 = pnand %p155, %p156
    %p158 = pneg %p157
    // Predicated region
    $region9: #{temporal_model_forward.1} parent=5 // pred_check
      _
    $region10: #{temporal_model_forward.1} parent=5 // pred_check_branch
      %160 = sbr.rel (%p157) target = $region12
    $region11: #{temporal_model_forward.1} parent=5 // pred_region
      %s161 = ssub.s32 %s11, 1
      // Predicated region
      $region13: #{temporal_model_forward.1} parent=11 // pred_check
        %p162 = pneg %p58
      $region14: #{temporal_model_forward.1} parent=11 // pred_check_branch
        %164 = sbr.rel (%p162) target = $region16
      $region15: #{temporal_model_forward.1} parent=11 // pred_region
        _
      $region16: #{temporal_model_forward.1} parent=11 // pred_fallthru
        _
      // Predicated region
      $region17: #{temporal_model_forward.1} parent=11 // pred_check
        %p165 = pneg %p79
      $region18: #{temporal_model_forward.1} parent=11 // pred_check_branch
        %167 = sbr.rel (%p165) target = $region20
      $region19: #{temporal_model_forward.1} parent=11 // pred_region
        _
      $region20: #{temporal_model_forward.1} parent=11 // pred_fallthru
        _
      // Predicated region
      $region21: #{temporal_model_forward.1} parent=11 // pred_check
        %p168 = pneg %p100
      $region22: #{temporal_model_forward.1} parent=11 // pred_check_branch
        %170 = sbr.rel (%p168) target = $region24
      $region23: #{temporal_model_forward.1} parent=11 // pred_region
        _
      $region24: #{temporal_model_forward.1} parent=11 // pred_fallthru
        _
      // Predicated region
      $region25: #{temporal_model_forward.1} parent=11 // pred_check
        %p171 = pneg %p121
      $region26: #{temporal_model_forward.1} parent=11 // pred_check_branch
        %173 = sbr.rel (%p171) target = $region28
      $region27: #{temporal_model_forward.1} parent=11 // pred_region
        _
      $region28: #{temporal_model_forward.1} parent=11 // pred_fallthru
        _
    $region12: #{temporal_model_forward.1} parent=5 // pred_fallthru
      _
    %p174 = scmp.lt.s32.totalorder %s11, 2
    // Predicated region
    $region29: #{temporal_model_forward.1} parent=5 // pred_check
      %p175 = pneg %p174
    $region30: #{temporal_model_forward.1} parent=5 // pred_check_branch
      %177 = sbr.rel (%p175) target = $region32
    $region31: #{temporal_model_forward.1} parent=5 // pred_region
      // Predicated region
      $region33: #{temporal_model_forward.1} parent=31 // pred_check
        %p178 = pneg %p31
      $region34: #{temporal_model_forward.1} parent=31 // pred_check_branch
        %180 = sbr.rel (%p178) target = $region36
      $region35: #{temporal_model_forward.1} parent=31 // pred_region
        %p181 = scmp.lt.s32.totalorder %s11, 1
        %s182 = scalar_select %p181, %s11, 1
        %s183 = smul.addr %s182, 4
        %s184 = smul.addr %s183, 4
        %s185 = scalar_lea.vmem %s0, %s184
      $region36: #{temporal_model_forward.1} parent=31 // pred_fallthru
        _
    $region32: #{temporal_model_forward.1} parent=5 // pred_fallthru
      _
    %p186 = scmp.le.s32.totalorder 1, %s11
    %p187 = scmp.lt.s32.totalorder %s11, 3
    %p188 = pnand %p186, %p187
    %p189 = pneg %p188
    // Predicated region
    $region37: #{temporal_model_forward.1} parent=5 // pred_check
      _
    $region38: #{temporal_model_forward.1} parent=5 // pred_check_branch
      %191 = sbr.rel (%p188) target = $region40
    $region39: #{temporal_model_forward.1} parent=5 // pred_region
      %s192 = ssub.s32 %s11, 1
      %p193 = scmp.lt.s32.totalorder %s16, 1
      %s194 = scalar_select %p193, %s16, 1
      %s195 = smul.addr %s194, 4
      %s196 = smul.addr %s195, 4
      %s197 = scalar_lea.vmem %s0, %s196
      %p198 = pneg %p37
      %p199 = pneg %p34
      %p200 = pneg %p58
      %p201 = pneg %p55
      %p202 = pneg %p79
      %p203 = pneg %p76
      %p204 = pneg %p100
      %p205 = pneg %p97
      %p206 = pneg %p121
      %p207 = pneg %p118
      %p208 = pneg %p147
      %p209 = pneg %p144
      %p210 = scmp.lt.s32.totalorder %s16, 1
      %s211 = scalar_select %p210, %s16, 1
      %s212 = smul.addr %s211, 2
      %s213 = smul.addr %s212, 4
      %s214 = scalar_lea.vmem %s5, %s213
      %p215 = scmp.lt.s32.totalorder %s16, 1
      %s216 = scalar_select %p215, %s16, 1
      %s217 = smul.addr %s216, 4
      %s218 = smul.addr %s217, 4
      %s219 = scalar_lea.vmem %s0, %s218
      %p220 = scmp.lt.s32.totalorder %s16, 1
      %s221 = scalar_select %p220, %s16, 1
      %s222 = smul.addr %s221, 2
      %s223 = smul.addr %s222, 4
      %s224 = scalar_lea.vmem %s5, %s223
      %v226 = vld [vmem:[%s219] sm:$0xf]
      %v227 = vld [vmem:[%s219 + $0x4] sm:$0xf]
      %v228 = vld [vmem:[%s219 + $0x8] sm:$0xf]
      %v229 = vld [vmem:[%s219 + $0xc] sm:$0xf]
      %v234 = vunpack.c.l.b16 %v226
      %v235 = vunpack.c.l.b16 %v227
      %v236 = vunpack.c.l.b16 %v228
      %v237 = vunpack.c.l.b16 %v229
      %v238 = vpack.c.b16 %v235, %v234
      %v239 = vpack.c.b16 %v237, %v236
      %vm242 = vcmask 1046528
      %v243 = vrot.slane %v238, 1
      %v244 = vrot.slane %v239, 1
      %v245 = vsel %vm242, %v243, %v244
      %vm248 = vcmask 1045504
      %v249 = vrot.slane %v238, 2
      %v250 = vrot.slane %v239, 2
      %v251 = vsel %vm248, %v249, %v250
      %v254 = vld [vmem:[%s1] sm:$0xf]
      %v255 = vld [vmem:[%s1 + $0x4] sm:$0xf]
      %v256 = vld [vmem:[%s1 + $0x8] sm:$0xf]
      %v257 = vld [vmem:[%s1 + $0xc] sm:$0xf]
      %v258 = vld [vmem:[%s1 + $0x10] sm:$0xf]
      %v259 = vld [vmem:[%s1 + $0x14] sm:$0xf]
      %v260 = vld [vmem:[%s1 + $0x18] sm:$0xf]
      %v261 = vld [vmem:[%s1 + $0x1c] sm:$0xf]
      %v262 = vld [vmem:[%s1 + $0x20] sm:$0xf]
      %v263 = vld [vmem:[%s1 + $0x24] sm:$0xf]
      %v264 = vld [vmem:[%s1 + $0x28] sm:$0xf]
      %v265 = vld [vmem:[%s1 + $0x2c] sm:$0xf]
      %v266 = vld [vmem:[%s1 + $0x30] sm:$0xf]
      %v267 = vld [vmem:[%s1 + $0x34] sm:$0xf]
      %v268 = vld [vmem:[%s1 + $0x38] sm:$0xf]
      %v269 = vld [vmem:[%s1 + $0x3c] sm:$0xf]
      %v270 = vld [vmem:[%s1 + $0x40] sm:$0xf]
      %v271 = vld [vmem:[%s1 + $0x44] sm:$0xf]
      %v272 = vld [vmem:[%s1 + $0x48] sm:$0xf]
      %v273 = vld [vmem:[%s1 + $0x4c] sm:$0xf]
      %v274 = vld [vmem:[%s1 + $0x50] sm:$0xf]
      %v275 = vld [vmem:[%s1 + $0x54] sm:$0xf]
      %v276 = vld [vmem:[%s1 + $0x58] sm:$0xf]
      %v277 = vld [vmem:[%s1 + $0x5c] sm:$0xf]
      %v278 = vld [vmem:[%s1 + $0x60] sm:$0xf]
      %v279 = vld [vmem:[%s1 + $0x64] sm:$0xf]
      %v280 = vld [vmem:[%s1 + $0x68] sm:$0xf]
      %v281 = vld [vmem:[%s1 + $0x6c] sm:$0xf]
      %v282 = vld [vmem:[%s1 + $0x70] sm:$0xf]
      %v283 = vld [vmem:[%s1 + $0x74] sm:$0xf]
      %v284 = vld [vmem:[%s1 + $0x78] sm:$0xf]
      %v285 = vld [vmem:[%s1 + $0x7c] sm:$0xf]
      %v286 = vld [vmem:[%s1 + $0x80] sm:$0xf]
      %v287 = vld [vmem:[%s1 + $0x84] sm:$0xf]
      %v288 = vld [vmem:[%s1 + $0x88] sm:$0xf]
      %v289 = vld [vmem:[%s1 + $0x8c] sm:$0xf]
      %v290 = vld [vmem:[%s1 + $0x90] sm:$0xf]
      %v291 = vld [vmem:[%s1 + $0x94] sm:$0xf]
      %v292 = vld [vmem:[%s1 + $0x98] sm:$0xf]
      %v293 = vld [vmem:[%s1 + $0x9c] sm:$0xf]
      %v294 = vld [vmem:[%s1 + $0xa0] sm:$0xf]
      %v295 = vld [vmem:[%s1 + $0xa4] sm:$0xf]
      %v296 = vld [vmem:[%s1 + $0xa8] sm:$0xf]
      %v297 = vld [vmem:[%s1 + $0xac] sm:$0xf]
      %v298 = vld [vmem:[%s1 + $0xb0] sm:$0xf]
      %v299 = vld [vmem:[%s1 + $0xb4] sm:$0xf]
      %v300 = vld [vmem:[%s1 + $0xb8] sm:$0xf]
      %v301 = vld [vmem:[%s1 + $0xbc] sm:$0xf]
      %v302 = vld [vmem:[%s4] sm:$0x1]
      %v303 = vlaneseq
      %v304 = vshrl.u32 %v303, 7
      %v305 = vsub.s32 0, %v304
      %v306 = vrot.slane %v302, %v305
      %v355 = vunpack.c.l.b16 %v254
      %v356 = vunpack.c.l.b16 %v255
      %v357 = vunpack.c.l.b16 %v256
      %v358 = vunpack.c.l.b16 %v257
      %v359 = vunpack.c.l.b16 %v258
      %v360 = vunpack.c.l.b16 %v259
      %v361 = vunpack.c.l.b16 %v260
      %v362 = vunpack.c.l.b16 %v261
      %v363 = vunpack.c.l.b16 %v262
      %v364 = vunpack.c.l.b16 %v263
      %v365 = vunpack.c.l.b16 %v264
      %v366 = vunpack.c.l.b16 %v265
      %v367 = vunpack.c.l.b16 %v266
      %v368 = vunpack.c.l.b16 %v267
      %v369 = vunpack.c.l.b16 %v268
      %v370 = vunpack.c.l.b16 %v269
      %v371 = vunpack.c.l.b16 %v270
      %v372 = vunpack.c.l.b16 %v271
      %v373 = vunpack.c.l.b16 %v272
      %v374 = vunpack.c.l.b16 %v273
      %v375 = vunpack.c.l.b16 %v274
      %v376 = vunpack.c.l.b16 %v275
      %v377 = vunpack.c.l.b16 %v276
      %v378 = vunpack.c.l.b16 %v277
      %v379 = vunpack.c.l.b16 %v278
      %v380 = vunpack.c.l.b16 %v279
      %v381 = vunpack.c.l.b16 %v280
      %v382 = vunpack.c.l.b16 %v281
      %v383 = vunpack.c.l.b16 %v282
      %v384 = vunpack.c.l.b16 %v283
      %v385 = vunpack.c.l.b16 %v284
      %v386 = vunpack.c.l.b16 %v285
      %v387 = vunpack.c.l.b16 %v286
      %v388 = vunpack.c.l.b16 %v287
      %v389 = vunpack.c.l.b16 %v288
      %v390 = vunpack.c.l.b16 %v289
      %v391 = vunpack.c.l.b16 %v290
      %v392 = vunpack.c.l.b16 %v291
      %v393 = vunpack.c.l.b16 %v292
      %v394 = vunpack.c.l.b16 %v293
      %v395 = vunpack.c.l.b16 %v294
      %v396 = vunpack.c.l.b16 %v295
      %v397 = vunpack.c.l.b16 %v296
      %v398 = vunpack.c.l.b16 %v297
      %v399 = vunpack.c.l.b16 %v298
      %v400 = vunpack.c.l.b16 %v299
      %v401 = vunpack.c.l.b16 %v300
      %v402 = vunpack.c.l.b16 %v301
      %v403 = vpack.c.b16 %v356, %v355
      %v404 = vpack.c.b16 %v358, %v357
      %v405 = vpack.c.b16 %v360, %v359
      %v406 = vpack.c.b16 %v362, %v361
      %v407 = vpack.c.b16 %v364, %v363
      %v408 = vpack.c.b16 %v366, %v365
      %v409 = vpack.c.b16 %v368, %v367
      %v410 = vpack.c.b16 %v370, %v369
      %v411 = vpack.c.b16 %v372, %v371
      %v412 = vpack.c.b16 %v374, %v373
      %v413 = vpack.c.b16 %v376, %v375
      %v414 = vpack.c.b16 %v378, %v377
      %v415 = vpack.c.b16 %v380, %v379
      %v416 = vpack.c.b16 %v382, %v381
      %v417 = vpack.c.b16 %v384, %v383
      %v418 = vpack.c.b16 %v386, %v385
      %v419 = vpack.c.b16 %v388, %v387
      %v420 = vpack.c.b16 %v390, %v389
      %v421 = vpack.c.b16 %v392, %v391
      %v422 = vpack.c.b16 %v394, %v393
      %v423 = vpack.c.b16 %v396, %v395
      %v424 = vpack.c.b16 %v398, %v397
      %v425 = vpack.c.b16 %v400, %v399
      %v426 = vpack.c.b16 %v402, %v401
      %451 = vmatprep.subr.bf16.mxu0 0
      %452 = vmatpush1.bf16.msra.mxu0 %v403
      %453 = vmatprep.subr.bf16.mxu0 0
      %454 = vmatpush1.bf16.msra.mxu0 %v404
      %455 = vmatprep.subr.bf16.mxu0 0
      %456 = vmatpush1.bf16.msra.mxu0 %v405
      %457 = vmatprep.subr.bf16.mxu0 0
      %458 = vmatpush1.bf16.msra.mxu0 %v406
      %459 = vmatprep.subr.bf16.mxu0 0
      %460 = vmatpush1.bf16.msra.mxu0 %v407
      %461 = vmatprep.subr.bf16.mxu0 0
      %462 = vmatpush1.bf16.msra.mxu0 %v408
      %463 = vmatprep.subr.bf16.mxu0 0
      %464 = vmatpush1.bf16.msra.mxu0 %v409
      %465 = vmatprep.subr.bf16.mxu0 0
      %466 = vmatpush1.bf16.msra.mxu0 %v410
      %467 = vmatprep.subr.bf16.mxu0 0
      %468 = vmatpush1.bf16.msra.mxu0 %v411
      %469 = vmatprep.subr.bf16.mxu0 0
      %470 = vmatpush1.bf16.msra.mxu0 %v412
      %471 = vmatprep.subr.bf16.mxu0 0
      %472 = vmatpush1.bf16.msra.mxu0 %v413
      %473 = vmatprep.subr.bf16.mxu0 0
      %474 = vmatpush1.bf16.msra.mxu0 %v414
      %475 = vmatprep.subr.bf16.mxu0 0
      %476 = vmatpush1.bf16.msra.mxu0 %v415
      %477 = vmatprep.subr.bf16.mxu0 0
      %478 = vmatpush1.bf16.msra.mxu0 %v416
      %479 = vmatprep.subr.bf16.mxu0 0
      %480 = vmatpush1.bf16.msra.mxu0 %v417
      %481 = vmatprep.subr.bf16.mxu0 0
      %482 = vmatpush1.bf16.msra.mxu0 %v418
      %483 = vmatprep.mubr.bf16.mxu0 %v245
      %484 = vmatmul.mubr.bf16.gmra.mrb[0].mxu0 %v238
      %v485 = vpop.f32.mrb[0].mxu0
      %v486 = vadd.f32 %v306, %v485
      %v487 = vpop.f32.mrb[0].mxu0
      %v488 = vpop.f32.mrb[0].mxu0
      %v489 = vadd.f32 %v306, %v488
      %v490 = vpop.f32.mrb[0].mxu0
      %491 = vmatprep.mubr.bf16.mxu0 %v244
      %492 = vmatmul.mubr.bf16.gmra.mrb[0].mxu0 %v239
      %v493 = vpop.f32.mrb[0].mxu0
      %v494 = vadd.f32 %v306, %v493
      %v495 = vpop.f32.mrb[0].mxu0
      %v496 = vpop.f32.mrb[0].mxu0
      %v497 = vadd.f32 %v306, %v496
      %v498 = vpop.f32.mrb[0].mxu0
      %499 = vdwg.mxu0
      %500 = vmatprep.subr.bf16.mxu0 0
      %501 = vmatpush1.bf16.msra.mxu0 %v419
      %502 = vmatprep.subr.bf16.mxu0 0
      %503 = vmatpush1.bf16.msra.mxu0 %v420
      %504 = vmatprep.subr.bf16.mxu0 0
      %505 = vmatpush1.bf16.msra.mxu0 %v421
      %506 = vmatprep.subr.bf16.mxu0 0
      %507 = vmatpush1.bf16.msra.mxu0 %v422
      %508 = vmatprep.subr.bf16.mxu0 0
      %509 = vmatpush1.bf16.msra.mxu0 %v423
      %510 = vmatprep.subr.bf16.mxu0 0
      %511 = vmatpush1.bf16.msra.mxu0 %v424
      %512 = vmatprep.subr.bf16.mxu0 0
      %513 = vmatpush1.bf16.msra.mxu0 %v425
      %514 = vmatprep.subr.bf16.mxu0 0
      %515 = vmatpush1.bf16.msra.mxu0 %v426
      %516 = vmatprep.subr.bf16.mxu0 0
      %517 = vmatpush1.bf16.msra.mxu0 0
      %518 = vmatprep.subr.bf16.mxu0 0
      %519 = vmatpush1.bf16.msra.mxu0 0
      %520 = vmatprep.subr.bf16.mxu0 0
      %521 = vmatpush1.bf16.msra.mxu0 0
      %522 = vmatprep.subr.bf16.mxu0 0
      %523 = vmatpush1.bf16.msra.mxu0 0
      %524 = vmatprep.subr.bf16.mxu0 0
      %525 = vmatpush1.bf16.msra.mxu0 0
      %526 = vmatprep.subr.bf16.mxu0 0
      %527 = vmatpush1.bf16.msra.mxu0 0
      %528 = vmatprep.subr.bf16.mxu0 0
      %529 = vmatpush1.bf16.msra.mxu0 0
      %530 = vmatprep.subr.bf16.mxu0 0
      %531 = vmatpush1.bf16.msra.mxu0 0
      %532 = vmatprep.mubr.bf16.mxu0 0
      %533 = vmatmul.mubr.bf16.gmra.mrb[0].mxu0 %v251
      %v534 = vpop.f32.mrb[0].mxu0
      %v535 = vadd.f32 %v486, %v534
      %v536 = vpop.f32.mrb[0].mxu0
      %v537 = vpop.f32.mrb[0].mxu0
      %v538 = vadd.f32 %v489, %v537
      %v539 = vpop.f32.mrb[0].mxu0
      %540 = vmatprep.mubr.bf16.mxu0 0
      %541 = vmatmul.mubr.bf16.gmra.mrb[0].mxu0 %v250
      %v542 = vpop.f32.mrb[0].mxu0
      %v543 = vadd.f32 %v494, %v542
      %v544 = vpop.f32.mrb[0].mxu0
      %v545 = vpop.f32.mrb[0].mxu0
      %v546 = vadd.f32 %v497, %v545
      %v547 = vpop.f32.mrb[0].mxu0
      %548 = vdwg.mxu0
      %v549 = vmax.f32 %v535, 0.0
      %v550 = vmax.f32 %v538, 0.0
      %v551 = vmax.f32 %v543, 0.0
      %v552 = vmax.f32 %v546, 0.0
      %v553 = vpack.c.bf16 %v550, %v549
      %v554 = vpack.c.bf16 %v552, %v551
      %vm557 = vcmask 1044480
      %v558 = vrot.slane %v553, 3
      %v559 = vrot.slane %v554, 3
      %v560 = vsel %vm557, %v558, %v559
      %vm562 = vcmask 1041408
      %v563 = vrot.slane %v553, 6
      %v564 = vrot.slane %v554, 6
      %v565 = vsel %vm562, %v563, %v564
      %v567 = vld [vmem:[%s2] sm:$0xf]
      %v568 = vld [vmem:[%s2 + $0x4] sm:$0xf]
      %v569 = vld [vmem:[%s2 + $0x8] sm:$0xf]
      %v570 = vld [vmem:[%s2 + $0xc] sm:$0xf]
      %v571 = vld [vmem:[%s2 + $0x10] sm:$0xf]
      %v572 = vld [vmem:[%s2 + $0x14] sm:$0xf]
      %v573 = vld [vmem:[%s2 + $0x18] sm:$0xf]
      %v574 = vld [vmem:[%s2 + $0x1c] sm:$0xf]
      %v575 = vld [vmem:[%s2 + $0x20] sm:$0xf]
      %v576 = vld [vmem:[%s2 + $0x24] sm:$0xf]
      %v577 = vld [vmem:[%s2 + $0x28] sm:$0xf]
      %v578 = vld [vmem:[%s2 + $0x2c] sm:$0xf]
      %v579 = vld [vmem:[%s2 + $0x30] sm:$0xf]
      %v580 = vld [vmem:[%s2 + $0x34] sm:$0xf]
      %v581 = vld [vmem:[%s2 + $0x38] sm:$0xf]
      %v582 = vld [vmem:[%s2 + $0x3c] sm:$0xf]
      %v583 = vld [vmem:[%s2 + $0x40] sm:$0xf]
      %v584 = vld [vmem:[%s2 + $0x44] sm:$0xf]
      %v585 = vld [vmem:[%s2 + $0x48] sm:$0xf]
      %v586 = vld [vmem:[%s2 + $0x4c] sm:$0xf]
      %v587 = vld [vmem:[%s2 + $0x50] sm:$0xf]
      %v588 = vld [vmem:[%s2 + $0x54] sm:$0xf]
      %v589 = vld [vmem:[%s2 + $0x58] sm:$0xf]
      %v590 = vld [vmem:[%s2 + $0x5c] sm:$0xf]
      %v591 = vld [vmem:[%s2 + $0x60] sm:$0xf]
      %v592 = vld [vmem:[%s2 + $0x64] sm:$0xf]
      %v593 = vld [vmem:[%s2 + $0x68] sm:$0xf]
      %v594 = vld [vmem:[%s2 + $0x6c] sm:$0xf]
      %v595 = vld [vmem:[%s2 + $0x70] sm:$0xf]
      %v596 = vld [vmem:[%s2 + $0x74] sm:$0xf]
      %v597 = vld [vmem:[%s2 + $0x78] sm:$0xf]
      %v598 = vld [vmem:[%s2 + $0x7c] sm:$0xf]
      %v599 = vld [vmem:[%s2 + $0x80] sm:$0xf]
      %v600 = vld [vmem:[%s2 + $0x84] sm:$0xf]
      %v601 = vld [vmem:[%s2 + $0x88] sm:$0xf]
      %v602 = vld [vmem:[%s2 + $0x8c] sm:$0xf]
      %v603 = vld [vmem:[%s2 + $0x90] sm:$0xf]
      %v604 = vld [vmem:[%s2 + $0x94] sm:$0xf]
      %v605 = vld [vmem:[%s2 + $0x98] sm:$0xf]
      %v606 = vld [vmem:[%s2 + $0x9c] sm:$0xf]
      %v607 = vld [vmem:[%s2 + $0xa0] sm:$0xf]
      %v608 = vld [vmem:[%s2 + $0xa4] sm:$0xf]
      %v609 = vld [vmem:[%s2 + $0xa8] sm:$0xf]
      %v610 = vld [vmem:[%s2 + $0xac] sm:$0xf]
      %v611 = vld [vmem:[%s2 + $0xb0] sm:$0xf]
      %v612 = vld [vmem:[%s2 + $0xb4] sm:$0xf]
      %v613 = vld [vmem:[%s2 + $0xb8] sm:$0xf]
      %v614 = vld [vmem:[%s2 + $0xbc] sm:$0xf]
      %v615 = vld [vmem:[%s4 + $0x1] sm:$0x1]
      %v616 = vlaneseq
      %v617 = vshrl.u32 %v616, 7
      %v618 = vsub.s32 0, %v617
      %v619 = vrot.slane %v615, %v618
      %v668 = vunpack.c.l.b16 %v567
      %v669 = vunpack.c.l.b16 %v568
      %v670 = vunpack.c.l.b16 %v569
      %v671 = vunpack.c.l.b16 %v570
      %v672 = vunpack.c.l.b16 %v571
      %v673 = vunpack.c.l.b16 %v572
      %v674 = vunpack.c.l.b16 %v573
      %v675 = vunpack.c.l.b16 %v574
      %v676 = vunpack.c.l.b16 %v575
      %v677 = vunpack.c.l.b16 %v576
      %v678 = vunpack.c.l.b16 %v577
      %v679 = vunpack.c.l.b16 %v578
      %v680 = vunpack.c.l.b16 %v579
      %v681 = vunpack.c.l.b16 %v580
      %v682 = vunpack.c.l.b16 %v581
      %v683 = vunpack.c.l.b16 %v582
      %v684 = vunpack.c.l.b16 %v583
      %v685 = vunpack.c.l.b16 %v584
      %v686 = vunpack.c.l.b16 %v585
      %v687 = vunpack.c.l.b16 %v586
      %v688 = vunpack.c.l.b16 %v587
      %v689 = vunpack.c.l.b16 %v588
      %v690 = vunpack.c.l.b16 %v589
      %v691 = vunpack.c.l.b16 %v590
      %v692 = vunpack.c.l.b16 %v591
      %v693 = vunpack.c.l.b16 %v592
      %v694 = vunpack.c.l.b16 %v593
      %v695 = vunpack.c.l.b16 %v594
      %v696 = vunpack.c.l.b16 %v595
      %v697 = vunpack.c.l.b16 %v596
      %v698 = vunpack.c.l.b16 %v597
      %v699 = vunpack.c.l.b16 %v598
      %v700 = vunpack.c.l.b16 %v599
      %v701 = vunpack.c.l.b16 %v600
      %v702 = vunpack.c.l.b16 %v601
      %v703 = vunpack.c.l.b16 %v602
      %v704 = vunpack.c.l.b16 %v603
      %v705 = vunpack.c.l.b16 %v604
      %v706 = vunpack.c.l.b16 %v605
      %v707 = vunpack.c.l.b16 %v606
      %v708 = vunpack.c.l.b16 %v607
      %v709 = vunpack.c.l.b16 %v608
      %v710 = vunpack.c.l.b16 %v609
      %v711 = vunpack.c.l.b16 %v610
      %v712 = vunpack.c.l.b16 %v611
      %v713 = vunpack.c.l.b16 %v612
      %v714 = vunpack.c.l.b16 %v613
      %v715 = vunpack.c.l.b16 %v614
      %v716 = vpack.c.b16 %v669, %v668
      %v717 = vpack.c.b16 %v671, %v670
      %v718 = vpack.c.b16 %v673, %v672
      %v719 = vpack.c.b16 %v675, %v674
      %v720 = vpack.c.b16 %v677, %v676
      %v721 = vpack.c.b16 %v679, %v678
      %v722 = vpack.c.b16 %v681, %v680
      %v723 = vpack.c.b16 %v683, %v682
      %v724 = vpack.c.b16 %v685, %v684
      %v725 = vpack.c.b16 %v687, %v686
      %v726 = vpack.c.b16 %v689, %v688
      %v727 = vpack.c.b16 %v691, %v690
      %v728 = vpack.c.b16 %v693, %v692
      %v729 = vpack.c.b16 %v695, %v694
      %v730 = vpack.c.b16 %v697, %v696
      %v731 = vpack.c.b16 %v699, %v698
      %v732 = vpack.c.b16 %v701, %v700
      %v733 = vpack.c.b16 %v703, %v702
      %v734 = vpack.c.b16 %v705, %v704
      %v735 = vpack.c.b16 %v707, %v706
      %v736 = vpack.c.b16 %v709, %v708
      %v737 = vpack.c.b16 %v711, %v710
      %v738 = vpack.c.b16 %v713, %v712
      %v739 = vpack.c.b16 %v715, %v714
      %764 = vmatprep.subr.bf16.mxu0 0
      %765 = vmatpush1.bf16.msra.mxu0 %v716
      %766 = vmatprep.subr.bf16.mxu0 0
      %767 = vmatpush1.bf16.msra.mxu0 %v717
      %768 = vmatprep.subr.bf16.mxu0 0
      %769 = vmatpush1.bf16.msra.mxu0 %v718
      %770 = vmatprep.subr.bf16.mxu0 0
      %771 = vmatpush1.bf16.msra.mxu0 %v719
      %772 = vmatprep.subr.bf16.mxu0 0
      %773 = vmatpush1.bf16.msra.mxu0 %v720
      %774 = vmatprep.subr.bf16.mxu0 0
      %775 = vmatpush1.bf16.msra.mxu0 %v721
      %776 = vmatprep.subr.bf16.mxu0 0
      %777 = vmatpush1.bf16.msra.mxu0 %v722
      %778 = vmatprep.subr.bf16.mxu0 0
      %779 = vmatpush1.bf16.msra.mxu0 %v723
      %780 = vmatprep.subr.bf16.mxu0 0
      %781 = vmatpush1.bf16.msra.mxu0 %v724
      %782 = vmatprep.subr.bf16.mxu0 0
      %783 = vmatpush1.bf16.msra.mxu0 %v725
      %784 = vmatprep.subr.bf16.mxu0 0
      %785 = vmatpush1.bf16.msra.mxu0 %v726
      %786 = vmatprep.subr.bf16.mxu0 0
      %787 = vmatpush1.bf16.msra.mxu0 %v727
      %788 = vmatprep.subr.bf16.mxu0 0
      %789 = vmatpush1.bf16.msra.mxu0 %v728
      %790 = vmatprep.subr.bf16.mxu0 0
      %791 = vmatpush1.bf16.msra.mxu0 %v729
      %792 = vmatprep.subr.bf16.mxu0 0
      %793 = vmatpush1.bf16.msra.mxu0 %v730
      %794 = vmatprep.subr.bf16.mxu0 0
      %795 = vmatpush1.bf16.msra.mxu0 %v731
      %796 = vmatprep.mubr.bf16.mxu0 %v560
      %797 = vmatmul.mubr.bf16.gmra.mrb[0].mxu0 %v553
      %v798 = vpop.f32.mrb[0].mxu0
      %v799 = vadd.f32 %v619, %v798
      %v800 = vpop.f32.mrb[0].mxu0
      %v801 = vpop.f32.mrb[0].mxu0
      %v802 = vadd.f32 %v619, %v801
      %v803 = vpop.f32.mrb[0].mxu0
      %804 = vdwg.mxu0
      %805 = vmatprep.subr.bf16.mxu0 0
      %806 = vmatpush1.bf16.msra.mxu0 %v732
      %807 = vmatprep.subr.bf16.mxu0 0
      %808 = vmatpush1.bf16.msra.mxu0 %v733
      %809 = vmatprep.subr.bf16.mxu0 0
      %810 = vmatpush1.bf16.msra.mxu0 %v734
      %811 = vmatprep.subr.bf16.mxu0 0
      %812 = vmatpush1.bf16.msra.mxu0 %v735
      %813 = vmatprep.subr.bf16.mxu0 0
      %814 = vmatpush1.bf16.msra.mxu0 %v736
      %815 = vmatprep.subr.bf16.mxu0 0
      %816 = vmatpush1.bf16.msra.mxu0 %v737
      %817 = vmatprep.subr.bf16.mxu0 0
      %818 = vmatpush1.bf16.msra.mxu0 %v738
      %819 = vmatprep.subr.bf16.mxu0 0
      %820 = vmatpush1.bf16.msra.mxu0 %v739
      %821 = vmatprep.subr.bf16.mxu0 0
      %822 = vmatpush1.bf16.msra.mxu0 0
      %823 = vmatprep.subr.bf16.mxu0 0
      %824 = vmatpush1.bf16.msra.mxu0 0
      %825 = vmatprep.subr.bf16.mxu0 0
      %826 = vmatpush1.bf16.msra.mxu0 0
      %827 = vmatprep.subr.bf16.mxu0 0
      %828 = vmatpush1.bf16.msra.mxu0 0
      %829 = vmatprep.subr.bf16.mxu0 0
      %830 = vmatpush1.bf16.msra.mxu0 0
      %831 = vmatprep.subr.bf16.mxu0 0
      %832 = vmatpush1.bf16.msra.mxu0 0
      %833 = vmatprep.subr.bf16.mxu0 0
      %834 = vmatpush1.bf16.msra.mxu0 0
      %835 = vmatprep.subr.bf16.mxu0 0
      %836 = vmatpush1.bf16.msra.mxu0 0
      %837 = vmatprep.mubr.bf16.mxu0 0
      %838 = vmatmul.mubr.bf16.gmra.mrb[0].mxu0 %v565
      %v839 = vpop.f32.mrb[0].mxu0
      %v840 = vadd.f32 %v799, %v839
      %v841 = vpop.f32.mrb[0].mxu0
      %v842 = vpop.f32.mrb[0].mxu0
      %v843 = vadd.f32 %v802, %v842
      %v844 = vpop.f32.mrb[0].mxu0
      %845 = vdwg.mxu0
      %v846 = vmax.f32 %v840, 0.0
      %v847 = vmax.f32 %v843, 0.0
      %v848 = vpack.c.bf16 %v847, %v846
      %v849 = vld [vmem:[%s3] sm:$0xf]
      %v850 = vld [vmem:[%s3 + $0x4] sm:$0xf]
      %v851 = vld [vmem:[%s3 + $0x8] sm:$0xf]
      %v852 = vld [vmem:[%s3 + $0xc] sm:$0xf]
      %v853 = vld [vmem:[%s3 + $0x10] sm:$0xf]
      %v854 = vld [vmem:[%s3 + $0x14] sm:$0xf]
      %v855 = vld [vmem:[%s3 + $0x18] sm:$0xf]
      %v856 = vld [vmem:[%s3 + $0x1c] sm:$0xf]
      %v857 = vld [vmem:[%s3 + $0x20] sm:$0xf]
      %v858 = vld [vmem:[%s3 + $0x24] sm:$0xf]
      %v859 = vld [vmem:[%s3 + $0x28] sm:$0xf]
      %v860 = vld [vmem:[%s3 + $0x2c] sm:$0xf]
      %v861 = vld [vmem:[%s3 + $0x30] sm:$0xf]
      %v862 = vld [vmem:[%s3 + $0x34] sm:$0xf]
      %v863 = vld [vmem:[%s3 + $0x38] sm:$0xf]
      %v864 = vld [vmem:[%s3 + $0x3c] sm:$0xf]
      %v865 = vld [vmem:[%s4 + $0x2] sm:$0x1]
      %v866 = vlaneseq
      %v867 = vshrl.u32 %v866, 7
      %v868 = vsub.s32 0, %v867
      %v869 = vrot.slane %v865, %v868
      %v886 = vunpack.c.l.b16 %v849
      %v887 = vunpack.c.l.b16 %v850
      %v888 = vunpack.c.l.b16 %v851
      %v889 = vunpack.c.l.b16 %v852
      %v890 = vunpack.c.l.b16 %v853
      %v891 = vunpack.c.l.b16 %v854
      %v892 = vunpack.c.l.b16 %v855
      %v893 = vunpack.c.l.b16 %v856
      %v894 = vunpack.c.l.b16 %v857
      %v895 = vunpack.c.l.b16 %v858
      %v896 = vunpack.c.l.b16 %v859
      %v897 = vunpack.c.l.b16 %v860
      %v898 = vunpack.c.l.b16 %v861
      %v899 = vunpack.c.l.b16 %v862
      %v900 = vunpack.c.l.b16 %v863
      %v901 = vunpack.c.l.b16 %v864
      %v902 = vpack.c.b16 %v887, %v886
      %v903 = vpack.c.b16 %v889, %v888
      %v904 = vpack.c.b16 %v891, %v890
      %v905 = vpack.c.b16 %v893, %v892
      %v906 = vpack.c.b16 %v895, %v894
      %v907 = vpack.c.b16 %v897, %v896
      %v908 = vpack.c.b16 %v899, %v898
      %v909 = vpack.c.b16 %v901, %v900
      %918 = vmatprep.subr.bf16.mxu0 0
      %919 = vmatpush1.bf16.msra.mxu0 %v902
      %920 = vmatprep.subr.bf16.mxu0 0
      %921 = vmatpush1.bf16.msra.mxu0 %v903
      %922 = vmatprep.subr.bf16.mxu0 0
      %923 = vmatpush1.bf16.msra.mxu0 %v904
      %924 = vmatprep.subr.bf16.mxu0 0
      %925 = vmatpush1.bf16.msra.mxu0 %v905
      %926 = vmatprep.subr.bf16.mxu0 0
      %927 = vmatpush1.bf16.msra.mxu0 %v906
      %928 = vmatprep.subr.bf16.mxu0 0
      %929 = vmatpush1.bf16.msra.mxu0 %v907
      %930 = vmatprep.subr.bf16.mxu0 0
      %931 = vmatpush1.bf16.msra.mxu0 %v908
      %932 = vmatprep.subr.bf16.mxu0 0
      %933 = vmatpush1.bf16.msra.mxu0 %v909
      %934 = vmatprep.subr.bf16.mxu0 0
      %935 = vmatpush1.bf16.msra.mxu0 0
      %936 = vmatprep.subr.bf16.mxu0 0
      %937 = vmatpush1.bf16.msra.mxu0 0
      %938 = vmatprep.subr.bf16.mxu0 0
      %939 = vmatpush1.bf16.msra.mxu0 0
      %940 = vmatprep.subr.bf16.mxu0 0
      %941 = vmatpush1.bf16.msra.mxu0 0
      %942 = vmatprep.subr.bf16.mxu0 0
      %943 = vmatpush1.bf16.msra.mxu0 0
      %944 = vmatprep.subr.bf16.mxu0 0
      %945 = vmatpush1.bf16.msra.mxu0 0
      %946 = vmatprep.subr.bf16.mxu0 0
      %947 = vmatpush1.bf16.msra.mxu0 0
      %948 = vmatprep.subr.bf16.mxu0 0
      %949 = vmatpush1.bf16.msra.mxu0 0
      %950 = vmatprep.mubr.bf16.mxu0 0
      %951 = vmatmul.mubr.bf16.gmra.mrb[0].mxu0 %v848
      %v952 = vpop.f32.mrb[0].mxu0
      %v953 = vadd.f32 %v869, %v952
      %v954 = vpop.f32.mrb[0].mxu0
      %v955 = vpop.f32.mrb[0].mxu0
      %v956 = vadd.f32 %v869, %v955
      %v957 = vpop.f32.mrb[0].mxu0
      %958 = vdwg.mxu0
      %v959 = vmax.f32 %v953, 0.0
      %v960 = vmax.f32 %v956, 0.0
      %v961 = vunpack.c.l.bf16 %v553
      %v962 = vunpack.c.h.bf16 %v553
      %v963 = vunpack.c.l.bf16 %v554
      %vm966 = vcmask 1045504
      %v967 = vrot.slane %v959, 2
      %v968 = vrot.slane %v960, 2
      %v969 = vsel %vm966, %v967, %v968
      %v973 = vadd.f32 %v961, %v967
      %v974 = vadd.f32 %v962, %v969
      %v975 = vadd.f32 %v963, %v968
      %v976 = vpack.c.bf16 %v974, %v973
      %v977 = vpack.c.bf16 %v975, %v975
      %v980 = vunpack.c.l.b16 %v976
      %v981 = vunpack.c.h.b16 %v976
      %v982 = vunpack.c.l.b16 %v977
      %v983 = vpack.c.b16 %v980, %v980
      %v984 = vpack.c.b16 %v981, %v981
      %v985 = vpack.c.b16 %v982, %v982
      %vm986 = vcmask 1040384
      %vm987 = vcmask 1044484
      %vm988 = vmor %vm986, %vm987
      %v989 = vrot.slane %v983, 7
      %v990 = vrot.slane %v989, 4
      %v991 = vrot.slane %v984, 7
      %v992 = vsel %vm988, %v990, %v991
      %v993 = vrot.slane %v991, 4
      %v994 = vrot.slane %v985, 7
      %v995 = vsel %vm988, %v993, %v994
      %998 = vst [vmem:[%s224] sm:$0xf] %v992
      %999 = vst [vmem:[%s224 + $0x4] sm:$0xf] %v995
      %p1000 = scmp.lt.s32.totalorder %s16, 1
      %s1001 = scalar_select %p1000, %s16, 1
      %s1002 = smul.addr %s1001, 2
      %s1003 = smul.addr %s1002, 4
      %s1004 = scalar_lea.vmem %s5, %s1003
      // Predicated region
      $region41: #{temporal_model_forward.1} parent=39 // pred_check
        %p1005 = pneg %p144
      $region42: #{temporal_model_forward.1} parent=39 // pred_check_branch
        %1007 = sbr.rel (%p1005) target = $region44
      $region43: #{temporal_model_forward.1} parent=39 // pred_region
        _
      $region44: #{temporal_model_forward.1} parent=39 // pred_fallthru
        _
    $region40: #{temporal_model_forward.1} parent=5 // pred_fallthru
      _
    %p1008 = scmp.le.s32.totalorder 2, %s11
    // Predicated region
    $region45: #{temporal_model_forward.1} parent=5 // pred_check
      %p1009 = pneg %p1008
    $region46: #{temporal_model_forward.1} parent=5 // pred_check_branch
      %1011 = sbr.rel (%p1009) target = $region48
    $region47: #{temporal_model_forward.1} parent=5 // pred_region
      %s1012 = ssub.s32 %s11, 2
      // Predicated region
      $region49: #{temporal_model_forward.1} parent=47 // pred_check
        %p1013 = pneg %p150
      $region50: #{temporal_model_forward.1} parent=47 // pred_check_branch
        %1015 = sbr.rel (%p1013) target = $region52
      $region51: #{temporal_model_forward.1} parent=47 // pred_region
        %p1016 = scmp.lt.s32.totalorder %s17, 1
        %s1017 = scalar_select %p1016, %s17, 1
        %s1018 = smul.addr %s1017, 2
        %s1019 = smul.addr %s1018, 4
        %s1020 = scalar_lea.vmem %s5, %s1019
      $region52: #{temporal_model_forward.1} parent=47 // pred_fallthru
        _
    $region48: #{temporal_model_forward.1} parent=5 // pred_fallthru
      _
  $region6: #{temporal_model_forward.1} parent=0 // loop_footer
    %s15 = sadd.s32 1, %s11
  $region7: #{temporal_model_forward.1} parent=0 // loop_footer_branch
    %10 = sbr.rel target = $region3
  $region8: #{temporal_model_forward.1} parent=0 // loop_exit
    _

</llo_original>
